<compile_context>
chip_gen: v6e
topology: v6e:2x2x1
jax: 0.10.0
libtpu: 0.0.40
codegen_flags: <defaults>
</compile_context>

<pallas_src>
import jax
import jax.numpy as jnp
from jax.experimental import pallas as pl
from jax.experimental.pallas import tpu as pltpu


def _round_up(x, m):
    return ((x + m - 1) // m) * m


def se_block_kernel(x_ref, w1_ref, b1_ref, w2_ref, b2_ref, o_ref):
    # x_ref : (C_IN, T)          f32   streamed activation tile (channels x pixels)
    # w1_ref: (C_MID_PAD, C_IN)  bf16  resident
    # b1_ref: (C_MID_PAD, 1)     f32   resident
    # w2_ref: (C_OUT, C_MID_PAD) bf16  resident
    # b2_ref: (C_OUT, 1)         f32   resident
    # o_ref : (C_OUT, T)         f32
    x = x_ref[...].astype(jnp.bfloat16)                      # cast in-kernel (VPU)
    h = jnp.dot(w1_ref[...], x, preferred_element_type=jnp.float32)
    h = jnp.maximum(h + b1_ref[...], 0.0)                    # bias + ReLU in f32
    y = jnp.dot(w2_ref[...], h.astype(jnp.bfloat16),
                preferred_element_type=jnp.float32)
    o_ref[...] = jax.nn.sigmoid(y + b2_ref[...]).astype(o_ref.dtype)


def se_block(x_nchw, w1, b1, w2, b2, *, tile_hw=2048):
    """x_nchw: (N, 320, H, W); w1: (80, 320); b1: (80,); w2: (320, 80); b2: (320,)."""
    n, c_in, h, w = x_nchw.shape
    c_mid = w1.shape[0]
    c_out = w2.shape[0]
    hw = h * w

    # Free reshape: NCHW -> (N, C, HW). No transpose, no copy.
    x3d = x_nchw.reshape(n, c_in, hw)

    # Zero-pad the hidden dim 80 -> 128 (lane / MXU aligned). Zeros are inert:
    # padded rows are relu(0 + 0) = 0 and w2's padded columns are zero.
    c_mid_pad = _round_up(c_mid, 128)
    w1_p = jnp.zeros((c_mid_pad, c_in), jnp.float32).at[:c_mid, :].set(w1)
    b1_p = jnp.zeros((c_mid_pad,), jnp.float32).at[:c_mid].set(b1)
    w2_p = jnp.zeros((c_out, c_mid_pad), jnp.float32).at[:, :c_mid].set(w2)

    w1_bf = w1_p.astype(jnp.bfloat16)                 # (C_MID_PAD, C_IN)
    w2_bf = w2_p.astype(jnp.bfloat16)                 # (C_OUT, C_MID_PAD)
    b1_2d = b1_p.reshape(c_mid_pad, 1)                # (C_MID_PAD, 1) f32
    b2_2d = b2.reshape(c_out, 1).astype(jnp.float32)  # (C_OUT, 1)    f32

    # Lane tile over HW: full extent when small (always legal), otherwise a
    # multiple of 128 (lane-dense stores); final partial block is write-masked.
    if hw <= tile_hw:
        tile = hw
        grid_hw = 1
    else:
        tile = tile_hw                                # multiple of 128
        grid_hw = pl.cdiv(hw, tile)

    grid = (n, grid_hw)

    cost = pl.CostEstimate(
        flops=2 * n * hw * (c_in * c_mid_pad + c_mid_pad * c_out),
        transcendentals=n * hw * c_out,
        bytes_accessed=(n * hw * (c_in + c_out) * 4                 # x in + y out (f32)
                        + (c_mid_pad * c_in + c_out * c_mid_pad) * 2  # weights (bf16)
                        + (c_mid_pad + c_out) * 4),                  # biases (f32)
    )

    out3d = pl.pallas_call(
        se_block_kernel,
        out_shape=jax.ShapeDtypeStruct((n, c_out, hw), jnp.float32),
        grid_spec=pltpu.PrefetchScalarGridSpec(
            num_scalar_prefetch=0,
            grid=grid,
            in_specs=[
                pl.BlockSpec((None, c_in, tile), lambda b, j: (b, 0, j)),   # streamed x
                pl.BlockSpec((c_mid_pad, c_in), lambda b, j: (0, 0)),       # resident w1
                pl.BlockSpec((c_mid_pad, 1), lambda b, j: (0, 0)),          # resident b1
                pl.BlockSpec((c_out, c_mid_pad), lambda b, j: (0, 0)),      # resident w2
                pl.BlockSpec((c_out, 1), lambda b, j: (0, 0)),              # resident b2
            ],
            out_specs=pl.BlockSpec((None, c_out, tile), lambda b, j: (b, 0, j)),
        ),
        compiler_params=pltpu.CompilerParams(
            dimension_semantics=("parallel", "parallel"),
            vmem_limit_bytes=32 * 1024 * 1024),
        cost_estimate=cost,
    )(x3d, w1_bf, b1_2d, w2_bf, b2_2d)

    # Free reshape back: (N, C_OUT, HW) -> NCHW.
    return out3d.reshape(n, c_out, h, w)


def reference(x_nchw, w1, b1, w2, b2):
    # Pure-JAX f32 reference of the same forward pass (1x1 convs == matmuls).
    n, c_in, h, w = x_nchw.shape
    x2d = jnp.transpose(x_nchw, (0, 2, 3, 1)).reshape(n * h * w, c_in)
    h1 = jnp.maximum(x2d @ w1.T + b1, 0.0)
    y = jax.nn.sigmoid(h1 @ w2.T + b2)
    return jnp.transpose(y.reshape(n, h, w, w2.shape[0]), (0, 3, 1, 2))


if __name__ == "__main__":
    key = jax.random.PRNGKey(0)
    k_x, k_w1, k_b1, k_w2, k_b2, k_x2 = jax.random.split(key, 6)

    N, C_IN, C_MID, C_OUT, H, W = 2, 320, 80, 320, 1, 1

    # Deterministic parameter init (roughly matching Conv2d fan-in scaling).
    w1 = jax.random.normal(k_w1, (C_MID, C_IN), dtype=jnp.float32) * (1.0 / C_IN) ** 0.5
    b1 = jax.random.normal(k_b1, (C_MID,), dtype=jnp.float32) * 0.01
    w2 = jax.random.normal(k_w2, (C_OUT, C_MID), dtype=jnp.float32) * (1.0 / C_MID) ** 0.5
    b2 = jax.random.normal(k_b2, (C_OUT,), dtype=jnp.float32) * 0.01

    # 1) SE-block shape from the module spec (H = W = 1, tiny spatial map).
    x = jax.random.normal(k_x, (N, C_IN, H, W), dtype=jnp.float32)
    out = jax.block_until_ready(se_block(x, w1, b1, w2, b2))
    ref = jax.block_until_ready(reference(x, w1, b1, w2, b2))
    assert out.shape == (N, C_OUT, H, W), out.shape
    # bf16 MXU operands -> loosened tolerance vs the f32 reference.
    assert jnp.allclose(out, ref, atol=2e-2, rtol=2e-2), "mismatch vs reference (1x1)"

    # 2) Larger spatial map with a small forced tile to exercise the multi-tile
    #    grid and the masked partial final block (HW = 400, tile = 128 -> grid 4).
    H2, W2 = 20, 20
    x_big = jax.random.normal(k_x2, (N, C_IN, H2, W2), dtype=jnp.float32)
    out_big = jax.block_until_ready(se_block(x_big, w1, b1, w2, b2, tile_hw=128))
    ref_big = jax.block_until_ready(reference(x_big, w1, b1, w2, b2))
    assert out_big.shape == (N, C_OUT, H2, W2), out_big.shape
    assert jnp.allclose(out_big, ref_big, atol=2e-2, rtol=2e-2), "mismatch vs reference (tiled)"

    print("KERNEL_OK")
</pallas_src>

<mosaic_0001>
module attributes {stable_mosaic.version = 11 : i64} {
  func.func @se_block_kernel(%arg0: i32, %arg1: i32, %arg2: memref<1x320x1xf32, #tpu.memory_space<vmem>>, %arg3: memref<128x320xbf16, #tpu.memory_space<vmem>>, %arg4: memref<128x1xf32, #tpu.memory_space<vmem>>, %arg5: memref<320x128xbf16, #tpu.memory_space<vmem>>, %arg6: memref<320x1xf32, #tpu.memory_space<vmem>>, %arg7: memref<1x320x1xf32, #tpu.memory_space<vmem>>) attributes {dimension_semantics = [#tpu.dimension_semantics<parallel>, #tpu.dimension_semantics<parallel>], iteration_bounds = array<i64: 2, 1>, scalar_prefetch = 0 : i64, scratch_operands = 0 : i64, tpu.core_type = #tpu.core_type<tc>, window_params = [{transform_indices = @transform_0, window_bounds = array<i64: 1, 320, 1>}, {pipeline_mode = #tpu.pipeline_mode<synchronous>, transform_indices = @transform_1, window_bounds = array<i64: 128, 320>}, {pipeline_mode = #tpu.pipeline_mode<synchronous>, transform_indices = @transform_2, window_bounds = array<i64: 128, 1>}, {pipeline_mode = #tpu.pipeline_mode<synchronous>, transform_indices = @transform_3, window_bounds = array<i64: 320, 128>}, {pipeline_mode = #tpu.pipeline_mode<synchronous>, transform_indices = @transform_4, window_bounds = array<i64: 320, 1>}, {transform_indices = @transform_5, window_bounds = array<i64: 1, 320, 1>}]} {
    %c0 = arith.constant 0 : index
    %c0_0 = arith.constant 0 : index
    %c0_1 = arith.constant 0 : index
    %0 = vector.load %arg2[%c0, %c0_0, %c0_1] : memref<1x320x1xf32, #tpu.memory_space<vmem>>, vector<1x320x1xf32>
    %1 = vector.shape_cast %0 : vector<1x320x1xf32> to vector<320x1xf32>
    %2 = arith.truncf %1 : vector<320x1xf32> to vector<320x1xbf16>
    %c0_2 = arith.constant 0 : index
    %c0_3 = arith.constant 0 : index
    %3 = vector.load %arg3[%c0_2, %c0_3] : memref<128x320xbf16, #tpu.memory_space<vmem>>, vector<128x320xbf16>
    %cst = arith.constant dense<0.000000e+00> : vector<128x1xf32>
    %4 = tpu.matmul %3, %2, %cst {dimension_numbers = #tpu.dot_dimension_numbers<[1], [0], [0], [1], [0, 0, 1, 1], [], []>} : vector<128x320xbf16>, vector<320x1xbf16>, vector<128x1xf32> -> vector<128x1xf32>
    %c0_4 = arith.constant 0 : index
    %c0_5 = arith.constant 0 : index
    %5 = vector.load %arg4[%c0_4, %c0_5] : memref<128x1xf32, #tpu.memory_space<vmem>>, vector<128x1xf32>
    %6 = arith.addf %4, %5 : vector<128x1xf32>
    %cst_6 = arith.constant 0.000000e+00 : f32
    %7 = vector.broadcast %cst_6 : f32 to vector<128x1xf32>
    %8 = arith.maximumf %6, %7 : vector<128x1xf32>
    %c0_7 = arith.constant 0 : index
    %c0_8 = arith.constant 0 : index
    %9 = vector.load %arg5[%c0_7, %c0_8] : memref<320x128xbf16, #tpu.memory_space<vmem>>, vector<320x128xbf16>
    %10 = arith.truncf %8 : vector<128x1xf32> to vector<128x1xbf16>
    %cst_9 = arith.constant dense<0.000000e+00> : vector<320x1xf32>
    %11 = tpu.matmul %9, %10, %cst_9 {dimension_numbers = #tpu.dot_dimension_numbers<[1], [0], [0], [1], [0, 0, 1, 1], [], []>} : vector<320x128xbf16>, vector<128x1xbf16>, vector<320x1xf32> -> vector<320x1xf32>
    %c0_10 = arith.constant 0 : index
    %c0_11 = arith.constant 0 : index
    %12 = vector.load %arg6[%c0_10, %c0_11] : memref<320x1xf32, #tpu.memory_space<vmem>>, vector<320x1xf32>
    %13 = arith.addf %11, %12 : vector<320x1xf32>
    %14 = arith.negf %13 : vector<320x1xf32>
    %15 = math.exp %14 : vector<320x1xf32>
    %cst_12 = arith.constant 1.000000e+00 : f32
    %16 = vector.broadcast %cst_12 : f32 to vector<320x1xf32>
    %17 = arith.addf %16, %15 : vector<320x1xf32>
    %18 = arith.divf %16, %17 : vector<320x1xf32>
    %c0_13 = arith.constant 0 : index
    %c0_14 = arith.constant 0 : index
    %c0_15 = arith.constant 0 : index
    %19 = vector.load %arg7[%c0_13, %c0_14, %c0_15] : memref<1x320x1xf32, #tpu.memory_space<vmem>>, vector<1x320x1xf32>
    %20 = vector.shape_cast %19 : vector<1x320x1xf32> to vector<320x1xf32>
    %21 = vector.shape_cast %18 : vector<320x1xf32> to vector<1x320x1xf32>
    tpu.vector_store %arg7[%c0_13, %c0_14, %c0_15], %21 {strides = array<i32>} : memref<1x320x1xf32, #tpu.memory_space<vmem>>, vector<1x320x1xf32>,
    return
  }
  func.func @transform_0(%arg0: i32, %arg1: i32) -> (i32, i32, i32) {
    %c0_i32 = arith.constant 0 : i32
    %c0_i32_0 = arith.constant 0 : i32
    return %arg0, %c0_i32, %arg1 : i32, i32, i32
  }
  func.func @transform_1(%arg0: i32, %arg1: i32) -> (i32, i32) {
    %c0_i32 = arith.constant 0 : i32
    %c0_i32_0 = arith.constant 0 : i32
    %c0_i32_1 = arith.constant 0 : i32
    return %c0_i32, %c0_i32_0 : i32, i32
  }
  func.func @transform_2(%arg0: i32, %arg1: i32) -> (i32, i32) {
    %c0_i32 = arith.constant 0 : i32
    %c0_i32_0 = arith.constant 0 : i32
    %c0_i32_1 = arith.constant 0 : i32
    return %c0_i32, %c0_i32_0 : i32, i32
  }
  func.func @transform_3(%arg0: i32, %arg1: i32) -> (i32, i32) {
    %c0_i32 = arith.constant 0 : i32
    %c0_i32_0 = arith.constant 0 : i32
    %c0_i32_1 = arith.constant 0 : i32
    return %c0_i32, %c0_i32_0 : i32, i32
  }
  func.func @transform_4(%arg0: i32, %arg1: i32) -> (i32, i32) {
    %c0_i32 = arith.constant 0 : i32
    %c0_i32_0 = arith.constant 0 : i32
    %c0_i32_1 = arith.constant 0 : i32
    return %c0_i32, %c0_i32_0 : i32, i32
  }
  func.func @transform_5(%arg0: i32, %arg1: i32) -> (i32, i32, i32) {
    %c0_i32 = arith.constant 0 : i32
    %c0_i32_0 = arith.constant 0 : i32
    return %arg0, %c0_i32, %arg1 : i32, i32, i32
  }
}

</mosaic_0001>

<llo_original>
// kernel: tpu_custom_call.1
$region0: #{tpu_custom_call.1}
  #allocation0 [shape = 'u32[]', space=smem, size = 0x4, offset = 0x4, fixed_abs, tag = 'smem constant byte address 0x4 - core index']
  #allocation1 [shape = 'u32[144,128]{1,0:T(1,128)}', space=vmem, size = 0x12000, scoped, tag = 'internal scratch']
  %s0 = inlined_call_operand.vmem [shape: f32[2,320,1], index: 0, kind: input, shape index: {}]
  %s1 = inlined_call_operand.vmem [shape: bf16[128,320], index: 1, kind: input, shape index: {}]
  %s2 = inlined_call_operand.vmem [shape: f32[128,1], index: 2, kind: input, shape index: {}]
  %s3 = inlined_call_operand.vmem [shape: bf16[320,128], index: 3, kind: input, shape index: {}]
  %s4 = inlined_call_operand.vmem [shape: f32[320,1], index: 4, kind: input, shape index: {}]
  %s5 = inlined_call_operand.vmem [shape: f32[2,320,1], index: 5, kind: output, shape index: {}]
  %s6 = sld [smem:[#allocation0]]
  $region53: #{tpu_custom_call.1} parent=0
    _
  %s8 = ssub.s32 1, %s6
  %s9 = scalar_select 0, %s8, %s6
  loop: start=0, step=1, limit=4
  $region2: #{tpu_custom_call.1} parent=0 // loop_pre_header
    _
  $region3: #{tpu_custom_call.1} parent=0 // loop_header
    %s11 = sphi 0, %s15
    %p12 = scmp.ge.s32.totalorder %s11, 4
    %s18 = sphi 0, %s30
    %s19 = sphi 0, %s26
    %s20 = sphi 0, %s18
    %s21 = sphi 0, %s19
    %s22 = sphi 0, %s20
    %s23 = sphi 0, %s21
    %s35 = sphi 0, %s37
    %s38 = sphi 0, %s35
    %s39 = sphi 0, %s38
    %s55 = sphi 0, %s39
    %s59 = sphi 0, %s59
    %s61 = sphi 0, %s59
    %s62 = sphi 0, %s61
    %s76 = sphi 0, %s62
    %s80 = sphi 0, %s80
    %s82 = sphi 0, %s80
    %s83 = sphi 0, %s82
    %s97 = sphi 0, %s83
    %s101 = sphi 0, %s101
    %s103 = sphi 0, %s101
    %s104 = sphi 0, %s103
    %s118 = sphi 0, %s104
    %s122 = sphi 0, %s122
    %s124 = sphi 0, %s122
    %s125 = sphi 0, %s124
    %s139 = sphi 0, %s125
    %s147 = sphi 0, %s149
    %s150 = sphi 0, %s147
    %s151 = sphi 0, %s150
    %s167 = sphi 0, %s151
  $region4: #{tpu_custom_call.1} parent=0 // loop_header_branch
    %14 = sbr.rel (%p12) target = $region8
  $region5: #{tpu_custom_call.1} parent=0 // loop_body
    %s16 = ssub.s32 %s11, 1
    %s17 = ssub.s32 %s11, 2
    %s24 = sadd.s32 1, %s19
    %p25 = scmp.ge.s32.totalorder %s24, 1
    %s26 = scalar_select %p25, 0, %s24
    %s27 = sadd.s32 1, %s18
    %s28 = scalar_select %p25, %s27, %s18
    %p29 = scmp.ge.s32.totalorder %s28, 2
    %s30 = scalar_select %p29, 0, %s28
    %s31 = ssub.s32 %s18, %s30
    %s32 = ssub.s32 %s19, %s26
    %s33 = sor.u32 %s31, %s32
    %p34 = scmp.eq.s32.totalorder %s33, 0
    %s36 = sadd.s32 %s35, 1
    %s37 = scalar_select %p34, %s35, %s36
    %p40 = pneg %p34
    %p41 = scmp.eq.s32.totalorder %s11, 1
    %p42 = por %p40, %p41
    %p43 = scmp.ne.s32.totalorder %s35, %s38
    %p44 = scmp.eq.s32.totalorder %s11, 0
    %p45 = por %p43, %p44
    %p46 = scmp.ne.s32.totalorder %s35, %s38
    %p47 = scmp.eq.s32.totalorder %s16, 1
    %p48 = por %p46, %p47
    %p49 = scmp.ne.s32.totalorder %s38, %s39
    %p50 = scmp.eq.s32.totalorder %s16, 0
    %p51 = por %p49, %p50
    %p52 = scmp.ne.s32.totalorder %s38, %s39
    %p53 = scmp.eq.s32.totalorder %s17, 1
    %p54 = por %p52, %p53
    %p56 = scmp.ne.s32.totalorder %s39, %s55
    %p57 = scmp.eq.s32.totalorder %s17, 0
    %p58 = por %p56, %p57
    %s60 = sadd.s32 %s59, 1
    %p63 = scmp.eq.s32.totalorder %s11, 1
    %p64 = scmp.ne.s32.totalorder %s59, %s61
    %p65 = scmp.eq.s32.totalorder %s11, 0
    %p66 = por %p64, %p65
    %p67 = scmp.ne.s32.totalorder %s59, %s61
    %p68 = scmp.eq.s32.totalorder %s16, 1
    %p69 = por %p67, %p68
    %p70 = scmp.ne.s32.totalorder %s61, %s62
    %p71 = scmp.eq.s32.totalorder %s16, 0
    %p72 = por %p70, %p71
    %p73 = scmp.ne.s32.totalorder %s61, %s62
    %p74 = scmp.eq.s32.totalorder %s17, 1
    %p75 = por %p73, %p74
    %p77 = scmp.ne.s32.totalorder %s62, %s76
    %p78 = scmp.eq.s32.totalorder %s17, 0
    %p79 = por %p77, %p78
    %s81 = sadd.s32 %s80, 1
    %p84 = scmp.eq.s32.totalorder %s11, 1
    %p85 = scmp.ne.s32.totalorder %s80, %s82
    %p86 = scmp.eq.s32.totalorder %s11, 0
    %p87 = por %p85, %p86
    %p88 = scmp.ne.s32.totalorder %s80, %s82
    %p89 = scmp.eq.s32.totalorder %s16, 1
    %p90 = por %p88, %p89
    %p91 = scmp.ne.s32.totalorder %s82, %s83
    %p92 = scmp.eq.s32.totalorder %s16, 0
    %p93 = por %p91, %p92
    %p94 = scmp.ne.s32.totalorder %s82, %s83
    %p95 = scmp.eq.s32.totalorder %s17, 1
    %p96 = por %p94, %p95
    %p98 = scmp.ne.s32.totalorder %s83, %s97
    %p99 = scmp.eq.s32.totalorder %s17, 0
    %p100 = por %p98, %p99
    %s102 = sadd.s32 %s101, 1
    %p105 = scmp.eq.s32.totalorder %s11, 1
    %p106 = scmp.ne.s32.totalorder %s101, %s103
    %p107 = scmp.eq.s32.totalorder %s11, 0
    %p108 = por %p106, %p107
    %p109 = scmp.ne.s32.totalorder %s101, %s103
    %p110 = scmp.eq.s32.totalorder %s16, 1
    %p111 = por %p109, %p110
    %p112 = scmp.ne.s32.totalorder %s103, %s104
    %p113 = scmp.eq.s32.totalorder %s16, 0
    %p114 = por %p112, %p113
    %p115 = scmp.ne.s32.totalorder %s103, %s104
    %p116 = scmp.eq.s32.totalorder %s17, 1
    %p117 = por %p115, %p116
    %p119 = scmp.ne.s32.totalorder %s104, %s118
    %p120 = scmp.eq.s32.totalorder %s17, 0
    %p121 = por %p119, %p120
    %s123 = sadd.s32 %s122, 1
    %p126 = scmp.eq.s32.totalorder %s11, 1
    %p127 = scmp.ne.s32.totalorder %s122, %s124
    %p128 = scmp.eq.s32.totalorder %s11, 0
    %p129 = por %p127, %p128
    %p130 = scmp.ne.s32.totalorder %s122, %s124
    %p131 = scmp.eq.s32.totalorder %s16, 1
    %p132 = por %p130, %p131
    %p133 = scmp.ne.s32.totalorder %s124, %s125
    %p134 = scmp.eq.s32.totalorder %s16, 0
    %p135 = por %p133, %p134
    %p136 = scmp.ne.s32.totalorder %s124, %s125
    %p137 = scmp.eq.s32.totalorder %s17, 1
    %p138 = por %p136, %p137
    %p140 = scmp.ne.s32.totalorder %s125, %s139
    %p141 = scmp.eq.s32.totalorder %s17, 0
    %p142 = por %p140, %p141
    %s143 = ssub.s32 %s18, %s30
    %s144 = ssub.s32 %s19, %s26
    %s145 = sor.u32 %s143, %s144
    %p146 = scmp.eq.s32.totalorder %s145, 0
    %s148 = sadd.s32 %s147, 1
    %s149 = scalar_select %p146, %s147, %s148
    %p152 = pneg %p146
    %p153 = scmp.eq.s32.totalorder %s11, 1
    %p154 = por %p152, %p153
    %p155 = scmp.ne.s32.totalorder %s147, %s150
    %p156 = scmp.eq.s32.totalorder %s11, 0
    %p157 = por %p155, %p156
    %p158 = scmp.ne.s32.totalorder %s147, %s150
    %p159 = scmp.eq.s32.totalorder %s16, 1
    %p160 = por %p158, %p159
    %p161 = scmp.ne.s32.totalorder %s150, %s151
    %p162 = scmp.eq.s32.totalorder %s16, 0
    %p163 = por %p161, %p162
    %p164 = scmp.ne.s32.totalorder %s150, %s151
    %p165 = scmp.eq.s32.totalorder %s17, 1
    %p166 = por %p164, %p165
    %p168 = scmp.ne.s32.totalorder %s151, %s167
    %p169 = scmp.eq.s32.totalorder %s17, 0
    %p170 = por %p168, %p169
    %p171 = scmp.le.s32.totalorder 1, %s11
    %p172 = scmp.lt.s32.totalorder %s11, 3
    %p173 = pnand %p171, %p172
    %p174 = pneg %p173
    // Predicated region
    $region9: #{tpu_custom_call.1} parent=5 // pred_check
      _
    $region10: #{tpu_custom_call.1} parent=5 // pred_check_branch
      %176 = sbr.rel (%p173) target = $region12
    $region11: #{tpu_custom_call.1} parent=5 // pred_region
      %s177 = ssub.s32 %s11, 1
      // Predicated region
      $region13: #{tpu_custom_call.1} parent=11 // pred_check
        %p178 = pneg %p72
      $region14: #{tpu_custom_call.1} parent=11 // pred_check_branch
        %180 = sbr.rel (%p178) target = $region16
      $region15: #{tpu_custom_call.1} parent=11 // pred_region
        _
      $region16: #{tpu_custom_call.1} parent=11 // pred_fallthru
        _
      // Predicated region
      $region17: #{tpu_custom_call.1} parent=11 // pred_check
        %p181 = pneg %p93
      $region18: #{tpu_custom_call.1} parent=11 // pred_check_branch
        %183 = sbr.rel (%p181) target = $region20
      $region19: #{tpu_custom_call.1} parent=11 // pred_region
        _
      $region20: #{tpu_custom_call.1} parent=11 // pred_fallthru
        _
      // Predicated region
      $region21: #{tpu_custom_call.1} parent=11 // pred_check
        %p184 = pneg %p114
      $region22: #{tpu_custom_call.1} parent=11 // pred_check_branch
        %186 = sbr.rel (%p184) target = $region24
      $region23: #{tpu_custom_call.1} parent=11 // pred_region
        _
      $region24: #{tpu_custom_call.1} parent=11 // pred_fallthru
        _
      // Predicated region
      $region25: #{tpu_custom_call.1} parent=11 // pred_check
        %p187 = pneg %p135
      $region26: #{tpu_custom_call.1} parent=11 // pred_check_branch
        %189 = sbr.rel (%p187) target = $region28
      $region27: #{tpu_custom_call.1} parent=11 // pred_region
        _
      $region28: #{tpu_custom_call.1} parent=11 // pred_fallthru
        _
    $region12: #{tpu_custom_call.1} parent=5 // pred_fallthru
      _
    %p190 = scmp.lt.s32.totalorder %s11, 2
    // Predicated region
    $region29: #{tpu_custom_call.1} parent=5 // pred_check
      %p191 = pneg %p190
    $region30: #{tpu_custom_call.1} parent=5 // pred_check_branch
      %193 = sbr.rel (%p191) target = $region32
    $region31: #{tpu_custom_call.1} parent=5 // pred_region
      // Predicated region
      $region33: #{tpu_custom_call.1} parent=31 // pred_check
        %p194 = pneg %p45
      $region34: #{tpu_custom_call.1} parent=31 // pred_check_branch
        %196 = sbr.rel (%p194) target = $region36
      $region35: #{tpu_custom_call.1} parent=31 // pred_region
        %p197 = scmp.lt.s32.totalorder %s18, 1
        %s198 = scalar_select %p197, %s18, 1
        %p199 = scmp.lt.s32.totalorder %s19, 0
        %s200 = scalar_select %p199, %s19, 0
        %s201 = smul.addr %s198, 40
        %s202 = sadd.s32 %s200, %s201
        %s203 = smul.addr %s202, 8
        %s204 = scalar_lea.vmem %s0, %s203
      $region36: #{tpu_custom_call.1} parent=31 // pred_fallthru
        _
    $region32: #{tpu_custom_call.1} parent=5 // pred_fallthru
      _
    %p205 = scmp.le.s32.totalorder 1, %s11
    %p206 = scmp.lt.s32.totalorder %s11, 3
    %p207 = pnand %p205, %p206
    %p208 = pneg %p207
    // Predicated region
    $region37: #{tpu_custom_call.1} parent=5 // pred_check
      _
    $region38: #{tpu_custom_call.1} parent=5 // pred_check_branch
      %210 = sbr.rel (%p207) target = $region40
    $region39: #{tpu_custom_call.1} parent=5 // pred_region
      %s211 = ssub.s32 %s11, 1
      %p212 = scmp.lt.s32.totalorder %s20, 1
      %s213 = scalar_select %p212, %s20, 1
      %p214 = scmp.lt.s32.totalorder %s21, 0
      %s215 = scalar_select %p214, %s21, 0
      %s216 = smul.addr %s213, 40
      %s217 = sadd.s32 %s215, %s216
      %s218 = smul.addr %s217, 8
      %s219 = scalar_lea.vmem %s0, %s218
      %p220 = pneg %p51
      %p221 = pneg %p48
      %p222 = pneg %p72
      %p223 = pneg %p69
      %p224 = pneg %p93
      %p225 = pneg %p90
      %p226 = pneg %p114
      %p227 = pneg %p111
      %p228 = pneg %p135
      %p229 = pneg %p132
      %p230 = pneg %p163
      %p231 = pneg %p160
      %p232 = scmp.lt.s32.totalorder %s20, 1
      %s233 = scalar_select %p232, %s20, 1
      %p234 = scmp.lt.s32.totalorder %s21, 0
      %s235 = scalar_select %p234, %s21, 0
      %s236 = smul.addr %s233, 40
      %s237 = sadd.s32 %s235, %s236
      %s238 = smul.addr %s237, 8
      %s239 = scalar_lea.vmem %s5, %s238
      %p240 = scmp.lt.s32.totalorder %s20, 1
      %s241 = scalar_select %p240, %s20, 1
      %p242 = scmp.lt.s32.totalorder %s21, 0
      %s243 = scalar_select %p242, %s21, 0
      %s244 = smul.addr %s241, 40
      %s245 = sadd.s32 %s243, %s244
      %s246 = smul.addr %s245, 8
      %s247 = scalar_lea.vmem %s0, %s246
      %p248 = scmp.lt.s32.totalorder %s20, 1
      %s249 = scalar_select %p248, %s20, 1
      %p250 = scmp.lt.s32.totalorder %s21, 0
      %s251 = scalar_select %p250, %s21, 0
      %s252 = smul.addr %s249, 40
      %s253 = sadd.s32 %s251, %s252
      %s254 = smul.addr %s253, 8
      %s255 = scalar_lea.vmem %s5, %s254
      %v257 = vld [vmem:[%s247] sm:$0xff]
      %v258 = vld [vmem:[%s247 + $0x8] sm:$0xff]
      %v259 = vld [vmem:[%s247 + $0x10] sm:$0xff]
      %v260 = vld [vmem:[%s247 + $0x18] sm:$0xff]
      %v261 = vld [vmem:[%s247 + $0x20] sm:$0xff]
      %v262 = vld [vmem:[%s247 + $0x28] sm:$0xff]
      %v263 = vld [vmem:[%s247 + $0x30] sm:$0xff]
      %v264 = vld [vmem:[%s247 + $0x38] sm:$0xff]
      %v265 = vld [vmem:[%s247 + $0x40] sm:$0xff]
      %v266 = vld [vmem:[%s247 + $0x48] sm:$0xff]
      %v267 = vld [vmem:[%s247 + $0x50] sm:$0xff]
      %v268 = vld [vmem:[%s247 + $0x58] sm:$0xff]
      %v269 = vld [vmem:[%s247 + $0x60] sm:$0xff]
      %v270 = vld [vmem:[%s247 + $0x68] sm:$0xff]
      %v271 = vld [vmem:[%s247 + $0x70] sm:$0xff]
      %v272 = vld [vmem:[%s247 + $0x78] sm:$0xff]
      %v273 = vld [vmem:[%s247 + $0x80] sm:$0xff]
      %v274 = vld [vmem:[%s247 + $0x88] sm:$0xff]
      %v275 = vld [vmem:[%s247 + $0x90] sm:$0xff]
      %v276 = vld [vmem:[%s247 + $0x98] sm:$0xff]
      %v277 = vld [vmem:[%s247 + $0xa0] sm:$0xff]
      %v278 = vld [vmem:[%s247 + $0xa8] sm:$0xff]
      %v279 = vld [vmem:[%s247 + $0xb0] sm:$0xff]
      %v280 = vld [vmem:[%s247 + $0xb8] sm:$0xff]
      %v281 = vld [vmem:[%s247 + $0xc0] sm:$0xff]
      %v282 = vld [vmem:[%s247 + $0xc8] sm:$0xff]
      %v283 = vld [vmem:[%s247 + $0xd0] sm:$0xff]
      %v284 = vld [vmem:[%s247 + $0xd8] sm:$0xff]
      %v285 = vld [vmem:[%s247 + $0xe0] sm:$0xff]
      %v286 = vld [vmem:[%s247 + $0xe8] sm:$0xff]
      %v287 = vld [vmem:[%s247 + $0xf0] sm:$0xff]
      %v288 = vld [vmem:[%s247 + $0xf8] sm:$0xff]
      %v289 = vld [vmem:[%s247 + $0x100] sm:$0xff]
      %v290 = vld [vmem:[%s247 + $0x108] sm:$0xff]
      %v291 = vld [vmem:[%s247 + $0x110] sm:$0xff]
      %v292 = vld [vmem:[%s247 + $0x118] sm:$0xff]
      %v293 = vld [vmem:[%s247 + $0x120] sm:$0xff]
      %v294 = vld [vmem:[%s247 + $0x128] sm:$0xff]
      %v295 = vld [vmem:[%s247 + $0x130] sm:$0xff]
      %v296 = vld [vmem:[%s247 + $0x138] sm:$0xff]
      %v297 = vpack.c.bf16 %v258, %v257
      %v298 = vpack.c.bf16 %v260, %v259
      %v299 = vpack.c.bf16 %v262, %v261
      %v300 = vpack.c.bf16 %v264, %v263
      %v301 = vpack.c.bf16 %v266, %v265
      %v302 = vpack.c.bf16 %v268, %v267
      %v303 = vpack.c.bf16 %v270, %v269
      %v304 = vpack.c.bf16 %v272, %v271
      %v305 = vpack.c.bf16 %v274, %v273
      %v306 = vpack.c.bf16 %v276, %v275
      %v307 = vpack.c.bf16 %v278, %v277
      %v308 = vpack.c.bf16 %v280, %v279
      %v309 = vpack.c.bf16 %v282, %v281
      %v310 = vpack.c.bf16 %v284, %v283
      %v311 = vpack.c.bf16 %v286, %v285
      %v312 = vpack.c.bf16 %v288, %v287
      %v313 = vpack.c.bf16 %v290, %v289
      %v314 = vpack.c.bf16 %v292, %v291
      %v315 = vpack.c.bf16 %v294, %v293
      %v316 = vpack.c.bf16 %v296, %v295
      %v317 = vld [vmem:[%s1] sm:$0xff]
      %v318 = vld [vmem:[%s1 + $0x8] sm:$0xf]
      %v319 = vld [vmem:[%s1 + $0xc] sm:$0xff]
      %v320 = vld [vmem:[%s1 + $0x14] sm:$0xf]
      %v321 = vld [vmem:[%s1 + $0x18] sm:$0xff]
      %v322 = vld [vmem:[%s1 + $0x20] sm:$0xf]
      %v323 = vld [vmem:[%s1 + $0x24] sm:$0xff]
      %v324 = vld [vmem:[%s1 + $0x2c] sm:$0xf]
      %v325 = vld [vmem:[%s1 + $0x30] sm:$0xff]
      %v326 = vld [vmem:[%s1 + $0x38] sm:$0xf]
      %v327 = vld [vmem:[%s1 + $0x3c] sm:$0xff]
      %v328 = vld [vmem:[%s1 + $0x44] sm:$0xf]
      %v329 = vld [vmem:[%s1 + $0x48] sm:$0xff]
      %v330 = vld [vmem:[%s1 + $0x50] sm:$0xf]
      %v331 = vld [vmem:[%s1 + $0x54] sm:$0xff]
      %v332 = vld [vmem:[%s1 + $0x5c] sm:$0xf]
      %v333 = vld [vmem:[%s1 + $0x60] sm:$0xff]
      %v334 = vld [vmem:[%s1 + $0x68] sm:$0xf]
      %v335 = vld [vmem:[%s1 + $0x6c] sm:$0xff]
      %v336 = vld [vmem:[%s1 + $0x74] sm:$0xf]
      %v337 = vld [vmem:[%s1 + $0x78] sm:$0xff]
      %v338 = vld [vmem:[%s1 + $0x80] sm:$0xf]
      %v339 = vld [vmem:[%s1 + $0x84] sm:$0xff]
      %v340 = vld [vmem:[%s1 + $0x8c] sm:$0xf]
      %v341 = vld [vmem:[%s1 + $0x90] sm:$0xff]
      %v342 = vld [vmem:[%s1 + $0x98] sm:$0xf]
      %v343 = vld [vmem:[%s1 + $0x9c] sm:$0xff]
      %v344 = vld [vmem:[%s1 + $0xa4] sm:$0xf]
      %v345 = vld [vmem:[%s1 + $0xa8] sm:$0xff]
      %v346 = vld [vmem:[%s1 + $0xb0] sm:$0xf]
      %v347 = vld [vmem:[%s1 + $0xb4] sm:$0xff]
      %v348 = vld [vmem:[%s1 + $0xbc] sm:$0xf]
      %v349 = vld [vmem:[%s2] sm:$0xff]
      %v350 = vld [vmem:[%s2 + $0x8] sm:$0xff]
      %v351 = vld [vmem:[%s2 + $0x10] sm:$0xff]
      %v352 = vld [vmem:[%s2 + $0x18] sm:$0xff]
      %v353 = vld [vmem:[%s2 + $0x20] sm:$0xff]
      %v354 = vld [vmem:[%s2 + $0x28] sm:$0xff]
      %v355 = vld [vmem:[%s2 + $0x30] sm:$0xff]
      %v356 = vld [vmem:[%s2 + $0x38] sm:$0xff]
      %v357 = vld [vmem:[%s2 + $0x40] sm:$0xff]
      %v358 = vld [vmem:[%s2 + $0x48] sm:$0xff]
      %v359 = vld [vmem:[%s2 + $0x50] sm:$0xff]
      %v360 = vld [vmem:[%s2 + $0x58] sm:$0xff]
      %v361 = vld [vmem:[%s2 + $0x60] sm:$0xff]
      %v362 = vld [vmem:[%s2 + $0x68] sm:$0xff]
      %v363 = vld [vmem:[%s2 + $0x70] sm:$0xff]
      %v364 = vld [vmem:[%s2 + $0x78] sm:$0xff]
      %v397 = vunpack.c.l.b16 %v317
      %v398 = vunpack.c.h.b16 %v317
      %v399 = vunpack.c.l.b16 %v318
      %v400 = vunpack.c.l.b16 %v319
      %v401 = vunpack.c.h.b16 %v319
      %v402 = vunpack.c.l.b16 %v320
      %v403 = vunpack.c.l.b16 %v321
      %v404 = vunpack.c.h.b16 %v321
      %v405 = vunpack.c.l.b16 %v322
      %v406 = vunpack.c.l.b16 %v323
      %v407 = vunpack.c.h.b16 %v323
      %v408 = vunpack.c.l.b16 %v324
      %v409 = vunpack.c.l.b16 %v325
      %v410 = vunpack.c.h.b16 %v325
      %v411 = vunpack.c.l.b16 %v326
      %v412 = vunpack.c.l.b16 %v327
      %v413 = vunpack.c.h.b16 %v327
      %v414 = vunpack.c.l.b16 %v328
      %v415 = vunpack.c.l.b16 %v329
      %v416 = vunpack.c.h.b16 %v329
      %v417 = vunpack.c.l.b16 %v330
      %v418 = vunpack.c.l.b16 %v331
      %v419 = vunpack.c.h.b16 %v331
      %v420 = vunpack.c.l.b16 %v332
      %v421 = vunpack.c.l.b16 %v333
      %v422 = vunpack.c.h.b16 %v333
      %v423 = vunpack.c.l.b16 %v334
      %v424 = vunpack.c.l.b16 %v335
      %v425 = vunpack.c.h.b16 %v335
      %v426 = vunpack.c.l.b16 %v336
      %v427 = vunpack.c.l.b16 %v337
      %v428 = vunpack.c.h.b16 %v337
      %v429 = vunpack.c.l.b16 %v338
      %v430 = vunpack.c.l.b16 %v339
      %v431 = vunpack.c.h.b16 %v339
      %v432 = vunpack.c.l.b16 %v340
      %v433 = vunpack.c.l.b16 %v341
      %v434 = vunpack.c.h.b16 %v341
      %v435 = vunpack.c.l.b16 %v342
      %v436 = vunpack.c.l.b16 %v343
      %v437 = vunpack.c.h.b16 %v343
      %v438 = vunpack.c.l.b16 %v344
      %v439 = vunpack.c.l.b16 %v345
      %v440 = vunpack.c.h.b16 %v345
      %v441 = vunpack.c.l.b16 %v346
      %v442 = vunpack.c.l.b16 %v347
      %v443 = vunpack.c.h.b16 %v347
      %v444 = vunpack.c.l.b16 %v348
      %v445 = vpack.c.b16 %v400, %v397
      %v446 = vpack.c.b16 %v401, %v398
      %v447 = vpack.c.b16 %v402, %v399
      %v448 = vpack.c.b16 %v406, %v403
      %v449 = vpack.c.b16 %v407, %v404
      %v450 = vpack.c.b16 %v408, %v405
      %v451 = vpack.c.b16 %v412, %v409
      %v452 = vpack.c.b16 %v413, %v410
      %v453 = vpack.c.b16 %v414, %v411
      %v454 = vpack.c.b16 %v418, %v415
      %v455 = vpack.c.b16 %v419, %v416
      %v456 = vpack.c.b16 %v420, %v417
      %v457 = vpack.c.b16 %v424, %v421
      %v458 = vpack.c.b16 %v425, %v422
      %v459 = vpack.c.b16 %v426, %v423
      %v460 = vpack.c.b16 %v430, %v427
      %v461 = vpack.c.b16 %v431, %v428
      %v462 = vpack.c.b16 %v432, %v429
      %v463 = vpack.c.b16 %v436, %v433
      %v464 = vpack.c.b16 %v437, %v434
      %v465 = vpack.c.b16 %v438, %v435
      %v466 = vpack.c.b16 %v442, %v439
      %v467 = vpack.c.b16 %v443, %v440
      %v468 = vpack.c.b16 %v444, %v441
      %vm485 = vcmask 523264
      %v487 = vsel %vm485, %v447, 0
      %v490 = vsel %vm485, %v450, 0
      %v493 = vsel %vm485, %v453, 0
      %v496 = vsel %vm485, %v456, 0
      %v499 = vsel %vm485, %v459, 0
      %v502 = vsel %vm485, %v462, 0
      %v505 = vsel %vm485, %v465, 0
      %v508 = vsel %vm485, %v468, 0
      %510 = vmatprep.subr.bf16.mxu0 0
      %511 = vmatpush1.bf16.msra.mxu0 %v304
      %512 = vmatprep.subr.bf16.mxu0 0
      %513 = vmatpush1.bf16.msra.mxu0 %v303
      %514 = vmatprep.subr.bf16.mxu0 0
      %515 = vmatpush1.bf16.msra.mxu0 %v302
      %516 = vmatprep.subr.bf16.mxu0 0
      %517 = vmatpush1.bf16.msra.mxu0 %v301
      %518 = vmatprep.subr.bf16.mxu0 0
      %519 = vmatpush1.bf16.msra.mxu0 %v300
      %520 = vmatprep.subr.bf16.mxu0 0
      %521 = vmatpush1.bf16.msra.mxu0 %v299
      %522 = vmatprep.subr.bf16.mxu0 0
      %523 = vmatpush1.bf16.msra.mxu0 %v298
      %524 = vmatprep.subr.bf16.mxu0 0
      %525 = vmatpush1.bf16.msra.mxu0 %v297
      %526 = vmatprep.subr.bf16.mxu0 0
      %527 = vmatpush2.bf16.msra.mxu0 %v312
      %528 = vmatprep.subr.bf16.mxu0 0
      %529 = vmatpush2.bf16.msra.mxu0 %v311
      %530 = vmatprep.subr.bf16.mxu0 0
      %531 = vmatpush2.bf16.msra.mxu0 %v310
      %532 = vmatprep.subr.bf16.mxu0 0
      %533 = vmatpush2.bf16.msra.mxu0 %v309
      %534 = vmatprep.subr.bf16.mxu0 0
      %535 = vmatpush2.bf16.msra.mxu0 %v308
      %536 = vmatprep.subr.bf16.mxu0 0
      %537 = vmatpush2.bf16.msra.mxu0 %v307
      %538 = vmatprep.subr.bf16.mxu0 0
      %539 = vmatpush2.bf16.msra.mxu0 %v306
      %540 = vmatprep.subr.bf16.mxu0 0
      %541 = vmatpush2.bf16.msra.mxu0 %v305
      %542 = vmatprep.mubr.bf16.mxu0 %v446
      %543 = vmatmul.mubr.bf16.gmra.mxu0 %v445
      %v544 = vpop.f32.mrf.mxu0
      %v545 = vadd.f32 %v349, %v544
      %v546 = vpop.f32.mrf.mxu0
      %v547 = vpop.f32.mrf.mxu0
      %v548 = vadd.f32 %v350, %v547
      %v549 = vpop.f32.mrf.mxu0
      %550 = vmatprep.mubr.bf16.mxu0 %v449
      %551 = vmatmul.mubr.bf16.gmra.mxu0 %v448
      %v552 = vpop.f32.mrf.mxu0
      %v553 = vadd.f32 %v351, %v552
      %v554 = vpop.f32.mrf.mxu0
      %v555 = vpop.f32.mrf.mxu0
      %v556 = vadd.f32 %v352, %v555
      %v557 = vpop.f32.mrf.mxu0
      %558 = vmatprep.mubr.bf16.mxu0 %v452
      %559 = vmatmul.mubr.bf16.gmra.mxu0 %v451
      %v560 = vpop.f32.mrf.mxu0
      %v561 = vadd.f32 %v353, %v560
      %v562 = vpop.f32.mrf.mxu0
      %v563 = vpop.f32.mrf.mxu0
      %v564 = vadd.f32 %v354, %v563
      %v565 = vpop.f32.mrf.mxu0
      %566 = vmatprep.mubr.bf16.mxu0 %v455
      %567 = vmatmul.mubr.bf16.gmra.mxu0 %v454
      %v568 = vpop.f32.mrf.mxu0
      %v569 = vadd.f32 %v355, %v568
      %v570 = vpop.f32.mrf.mxu0
      %v571 = vpop.f32.mrf.mxu0
      %v572 = vadd.f32 %v356, %v571
      %v573 = vpop.f32.mrf.mxu0
      %574 = vmatprep.mubr.bf16.mxu0 %v458
      %575 = vmatmul.mubr.bf16.gmra.mxu0 %v457
      %v576 = vpop.f32.mrf.mxu0
      %v577 = vadd.f32 %v357, %v576
      %v578 = vpop.f32.mrf.mxu0
      %v579 = vpop.f32.mrf.mxu0
      %v580 = vadd.f32 %v358, %v579
      %v581 = vpop.f32.mrf.mxu0
      %582 = vmatprep.mubr.bf16.mxu0 %v461
      %583 = vmatmul.mubr.bf16.gmra.mxu0 %v460
      %v584 = vpop.f32.mrf.mxu0
      %v585 = vadd.f32 %v359, %v584
      %v586 = vpop.f32.mrf.mxu0
      %v587 = vpop.f32.mrf.mxu0
      %v588 = vadd.f32 %v360, %v587
      %v589 = vpop.f32.mrf.mxu0
      %590 = vmatprep.mubr.bf16.mxu0 %v464
      %591 = vmatmul.mubr.bf16.gmra.mxu0 %v463
      %v592 = vpop.f32.mrf.mxu0
      %v593 = vadd.f32 %v361, %v592
      %v594 = vpop.f32.mrf.mxu0
      %v595 = vpop.f32.mrf.mxu0
      %v596 = vadd.f32 %v362, %v595
      %v597 = vpop.f32.mrf.mxu0
      %598 = vmatprep.mubr.bf16.mxu0 %v467
      %599 = vmatmul.mubr.bf16.gmra.mxu0 %v466
      %v600 = vpop.f32.mrf.mxu0
      %v601 = vadd.f32 %v363, %v600
      %v602 = vpop.f32.mrf.mxu0
      %v603 = vpop.f32.mrf.mxu0
      %v604 = vadd.f32 %v364, %v603
      %v605 = vpop.f32.mrf.mxu0
      %606 = vdwg.mxu0
      %607 = vmatprep.subr.bf16.mxu0 0
      %608 = vmatpush1.bf16.msra.mxu0 0
      %609 = vmatprep.subr.bf16.mxu0 0
      %610 = vmatpush1.bf16.msra.mxu0 0
      %611 = vmatprep.subr.bf16.mxu0 0
      %612 = vmatpush1.bf16.msra.mxu0 0
      %613 = vmatprep.subr.bf16.mxu0 0
      %614 = vmatpush1.bf16.msra.mxu0 0
      %615 = vmatprep.subr.bf16.mxu0 0
      %616 = vmatpush1.bf16.msra.mxu0 %v316
      %617 = vmatprep.subr.bf16.mxu0 0
      %618 = vmatpush1.bf16.msra.mxu0 %v315
      %619 = vmatprep.subr.bf16.mxu0 0
      %620 = vmatpush1.bf16.msra.mxu0 %v314
      %621 = vmatprep.subr.bf16.mxu0 0
      %622 = vmatpush1.bf16.msra.mxu0 %v313
      %623 = vmatprep.subr.bf16.mxu0 0
      %624 = vmatpush2.bf16.msra.mxu0 0
      %625 = vmatprep.subr.bf16.mxu0 0
      %626 = vmatpush2.bf16.msra.mxu0 0
      %627 = vmatprep.subr.bf16.mxu0 0
      %628 = vmatpush2.bf16.msra.mxu0 0
      %629 = vmatprep.subr.bf16.mxu0 0
      %630 = vmatpush2.bf16.msra.mxu0 0
      %631 = vmatprep.subr.bf16.mxu0 0
      %632 = vmatpush2.bf16.msra.mxu0 0
      %633 = vmatprep.subr.bf16.mxu0 0
      %634 = vmatpush2.bf16.msra.mxu0 0
      %635 = vmatprep.subr.bf16.mxu0 0
      %636 = vmatpush2.bf16.msra.mxu0 0
      %637 = vmatprep.subr.bf16.mxu0 0
      %638 = vmatpush2.bf16.msra.mxu0 0
      %639 = vmatprep.mubr.bf16.mxu0 0
      %640 = vmatmul.mubr.bf16.gmra.mxu0 %v487
      %v641 = vpop.f32.mrf.mxu0
      %v642 = vadd.f32 %v545, %v641
      %v643 = vpop.f32.mrf.mxu0
      %v644 = vpop.f32.mrf.mxu0
      %v645 = vadd.f32 %v548, %v644
      %v646 = vpop.f32.mrf.mxu0
      %647 = vmatprep.mubr.bf16.mxu0 0
      %648 = vmatmul.mubr.bf16.gmra.mxu0 %v490
      %v649 = vpop.f32.mrf.mxu0
      %v650 = vadd.f32 %v553, %v649
      %v651 = vpop.f32.mrf.mxu0
      %v652 = vpop.f32.mrf.mxu0
      %v653 = vadd.f32 %v556, %v652
      %v654 = vpop.f32.mrf.mxu0
      %655 = vmatprep.mubr.bf16.mxu0 0
      %656 = vmatmul.mubr.bf16.gmra.mxu0 %v493
      %v657 = vpop.f32.mrf.mxu0
      %v658 = vadd.f32 %v561, %v657
      %v659 = vpop.f32.mrf.mxu0
      %v660 = vpop.f32.mrf.mxu0
      %v661 = vadd.f32 %v564, %v660
      %v662 = vpop.f32.mrf.mxu0
      %663 = vmatprep.mubr.bf16.mxu0 0
      %664 = vmatmul.mubr.bf16.gmra.mxu0 %v496
      %v665 = vpop.f32.mrf.mxu0
      %v666 = vadd.f32 %v569, %v665
      %v667 = vpop.f32.mrf.mxu0
      %v668 = vpop.f32.mrf.mxu0
      %v669 = vadd.f32 %v572, %v668
      %v670 = vpop.f32.mrf.mxu0
      %671 = vmatprep.mubr.bf16.mxu0 0
      %672 = vmatmul.mubr.bf16.gmra.mxu0 %v499
      %v673 = vpop.f32.mrf.mxu0
      %v674 = vadd.f32 %v577, %v673
      %v675 = vpop.f32.mrf.mxu0
      %v676 = vpop.f32.mrf.mxu0
      %v677 = vadd.f32 %v580, %v676
      %v678 = vpop.f32.mrf.mxu0
      %679 = vmatprep.mubr.bf16.mxu0 0
      %680 = vmatmul.mubr.bf16.gmra.mxu0 %v502
      %v681 = vpop.f32.mrf.mxu0
      %v682 = vadd.f32 %v585, %v681
      %v683 = vpop.f32.mrf.mxu0
      %v684 = vpop.f32.mrf.mxu0
      %v685 = vadd.f32 %v588, %v684
      %v686 = vpop.f32.mrf.mxu0
      %687 = vmatprep.mubr.bf16.mxu0 0
      %688 = vmatmul.mubr.bf16.gmra.mxu0 %v505
      %v689 = vpop.f32.mrf.mxu0
      %v690 = vadd.f32 %v593, %v689
      %v691 = vpop.f32.mrf.mxu0
      %v692 = vpop.f32.mrf.mxu0
      %v693 = vadd.f32 %v596, %v692
      %v694 = vpop.f32.mrf.mxu0
      %695 = vmatprep.mubr.bf16.mxu0 0
      %696 = vmatmul.mubr.bf16.gmra.mxu0 %v508
      %v697 = vpop.f32.mrf.mxu0
      %v698 = vadd.f32 %v601, %v697
      %v699 = vpop.f32.mrf.mxu0
      %v700 = vpop.f32.mrf.mxu0
      %v701 = vadd.f32 %v604, %v700
      %v702 = vpop.f32.mrf.mxu0
      %703 = vdwg.mxu0
      %v704 = vmax.f32 %v642, 0.0
      %v705 = vmax.f32 %v645, 0.0
      %v706 = vmax.f32 %v650, 0.0
      %v707 = vmax.f32 %v653, 0.0
      %v708 = vmax.f32 %v658, 0.0
      %v709 = vmax.f32 %v661, 0.0
      %v710 = vmax.f32 %v666, 0.0
      %v711 = vmax.f32 %v669, 0.0
      %v712 = vmax.f32 %v674, 0.0
      %v713 = vmax.f32 %v677, 0.0
      %v714 = vmax.f32 %v682, 0.0
      %v715 = vmax.f32 %v685, 0.0
      %v716 = vmax.f32 %v690, 0.0
      %v717 = vmax.f32 %v693, 0.0
      %v718 = vmax.f32 %v698, 0.0
      %v719 = vmax.f32 %v701, 0.0
      %v720 = vld [vmem:[%s3] sm:$0xf]
      %v721 = vld [vmem:[%s3 + $0x4] sm:$0xf]
      %v722 = vld [vmem:[%s3 + $0x8] sm:$0xf]
      %v723 = vld [vmem:[%s3 + $0xc] sm:$0xf]
      %v724 = vld [vmem:[%s3 + $0x10] sm:$0xf]
      %v725 = vld [vmem:[%s3 + $0x14] sm:$0xf]
      %v726 = vld [vmem:[%s3 + $0x18] sm:$0xf]
      %v727 = vld [vmem:[%s3 + $0x1c] sm:$0xf]
      %v728 = vld [vmem:[%s3 + $0x20] sm:$0xf]
      %v729 = vld [vmem:[%s3 + $0x24] sm:$0xf]
      %v730 = vld [vmem:[%s3 + $0x28] sm:$0xf]
      %v731 = vld [vmem:[%s3 + $0x2c] sm:$0xf]
      %v732 = vld [vmem:[%s3 + $0x30] sm:$0xf]
      %v733 = vld [vmem:[%s3 + $0x34] sm:$0xf]
      %v734 = vld [vmem:[%s3 + $0x38] sm:$0xf]
      %v735 = vld [vmem:[%s3 + $0x3c] sm:$0xf]
      %v736 = vld [vmem:[%s3 + $0x40] sm:$0xf]
      %v737 = vld [vmem:[%s3 + $0x44] sm:$0xf]
      %v738 = vld [vmem:[%s3 + $0x48] sm:$0xf]
      %v739 = vld [vmem:[%s3 + $0x4c] sm:$0xf]
      %v740 = vld [vmem:[%s3 + $0x50] sm:$0xf]
      %v741 = vld [vmem:[%s3 + $0x54] sm:$0xf]
      %v742 = vld [vmem:[%s3 + $0x58] sm:$0xf]
      %v743 = vld [vmem:[%s3 + $0x5c] sm:$0xf]
      %v744 = vld [vmem:[%s3 + $0x60] sm:$0xf]
      %v745 = vld [vmem:[%s3 + $0x64] sm:$0xf]
      %v746 = vld [vmem:[%s3 + $0x68] sm:$0xf]
      %v747 = vld [vmem:[%s3 + $0x6c] sm:$0xf]
      %v748 = vld [vmem:[%s3 + $0x70] sm:$0xf]
      %v749 = vld [vmem:[%s3 + $0x74] sm:$0xf]
      %v750 = vld [vmem:[%s3 + $0x78] sm:$0xf]
      %v751 = vld [vmem:[%s3 + $0x7c] sm:$0xf]
      %v752 = vld [vmem:[%s3 + $0x80] sm:$0xf]
      %v753 = vld [vmem:[%s3 + $0x84] sm:$0xf]
      %v754 = vld [vmem:[%s3 + $0x88] sm:$0xf]
      %v755 = vld [vmem:[%s3 + $0x8c] sm:$0xf]
      %v756 = vld [vmem:[%s3 + $0x90] sm:$0xf]
      %v757 = vld [vmem:[%s3 + $0x94] sm:$0xf]
      %v758 = vld [vmem:[%s3 + $0x98] sm:$0xf]
      %v759 = vld [vmem:[%s3 + $0x9c] sm:$0xf]
      %v760 = vpack.c.bf16 %v705, %v704
      %v761 = vpack.c.bf16 %v707, %v706
      %v762 = vpack.c.bf16 %v709, %v708
      %v763 = vpack.c.bf16 %v711, %v710
      %v764 = vpack.c.bf16 %v713, %v712
      %v765 = vpack.c.bf16 %v715, %v714
      %v766 = vpack.c.bf16 %v717, %v716
      %v767 = vpack.c.bf16 %v719, %v718
      %v768 = vld [vmem:[%s4] sm:$0xff]
      %v769 = vld [vmem:[%s4 + $0x8] sm:$0xff]
      %v770 = vld [vmem:[%s4 + $0x10] sm:$0xff]
      %v771 = vld [vmem:[%s4 + $0x18] sm:$0xff]
      %v772 = vld [vmem:[%s4 + $0x20] sm:$0xff]
      %v773 = vld [vmem:[%s4 + $0x28] sm:$0xff]
      %v774 = vld [vmem:[%s4 + $0x30] sm:$0xff]
      %v775 = vld [vmem:[%s4 + $0x38] sm:$0xff]
      %v776 = vld [vmem:[%s4 + $0x40] sm:$0xff]
      %v777 = vld [vmem:[%s4 + $0x48] sm:$0xff]
      %v778 = vld [vmem:[%s4 + $0x50] sm:$0xff]
      %v779 = vld [vmem:[%s4 + $0x58] sm:$0xff]
      %v780 = vld [vmem:[%s4 + $0x60] sm:$0xff]
      %v781 = vld [vmem:[%s4 + $0x68] sm:$0xff]
      %v782 = vld [vmem:[%s4 + $0x70] sm:$0xff]
      %v783 = vld [vmem:[%s4 + $0x78] sm:$0xff]
      %v784 = vld [vmem:[%s4 + $0x80] sm:$0xff]
      %v785 = vld [vmem:[%s4 + $0x88] sm:$0xff]
      %v786 = vld [vmem:[%s4 + $0x90] sm:$0xff]
      %v787 = vld [vmem:[%s4 + $0x98] sm:$0xff]
      %v788 = vld [vmem:[%s4 + $0xa0] sm:$0xff]
      %v789 = vld [vmem:[%s4 + $0xa8] sm:$0xff]
      %v790 = vld [vmem:[%s4 + $0xb0] sm:$0xff]
      %v791 = vld [vmem:[%s4 + $0xb8] sm:$0xff]
      %v792 = vld [vmem:[%s4 + $0xc0] sm:$0xff]
      %v793 = vld [vmem:[%s4 + $0xc8] sm:$0xff]
      %v794 = vld [vmem:[%s4 + $0xd0] sm:$0xff]
      %v795 = vld [vmem:[%s4 + $0xd8] sm:$0xff]
      %v796 = vld [vmem:[%s4 + $0xe0] sm:$0xff]
      %v797 = vld [vmem:[%s4 + $0xe8] sm:$0xff]
      %v798 = vld [vmem:[%s4 + $0xf0] sm:$0xff]
      %v799 = vld [vmem:[%s4 + $0xf8] sm:$0xff]
      %v800 = vld [vmem:[%s4 + $0x100] sm:$0xff]
      %v801 = vld [vmem:[%s4 + $0x108] sm:$0xff]
      %v802 = vld [vmem:[%s4 + $0x110] sm:$0xff]
      %v803 = vld [vmem:[%s4 + $0x118] sm:$0xff]
      %v804 = vld [vmem:[%s4 + $0x120] sm:$0xff]
      %v805 = vld [vmem:[%s4 + $0x128] sm:$0xff]
      %v806 = vld [vmem:[%s4 + $0x130] sm:$0xff]
      %v807 = vld [vmem:[%s4 + $0x138] sm:$0xff]
      %v848 = vunpack.c.l.b16 %v720
      %v849 = vunpack.c.l.b16 %v721
      %v850 = vunpack.c.l.b16 %v722
      %v851 = vunpack.c.l.b16 %v723
      %v852 = vunpack.c.l.b16 %v724
      %v853 = vunpack.c.l.b16 %v725
      %v854 = vunpack.c.l.b16 %v726
      %v855 = vunpack.c.l.b16 %v727
      %v856 = vunpack.c.l.b16 %v728
      %v857 = vunpack.c.l.b16 %v729
      %v858 = vunpack.c.l.b16 %v730
      %v859 = vunpack.c.l.b16 %v731
      %v860 = vunpack.c.l.b16 %v732
      %v861 = vunpack.c.l.b16 %v733
      %v862 = vunpack.c.l.b16 %v734
      %v863 = vunpack.c.l.b16 %v735
      %v864 = vunpack.c.l.b16 %v736
      %v865 = vunpack.c.l.b16 %v737
      %v866 = vunpack.c.l.b16 %v738
      %v867 = vunpack.c.l.b16 %v739
      %v868 = vunpack.c.l.b16 %v740
      %v869 = vunpack.c.l.b16 %v741
      %v870 = vunpack.c.l.b16 %v742
      %v871 = vunpack.c.l.b16 %v743
      %v872 = vunpack.c.l.b16 %v744
      %v873 = vunpack.c.l.b16 %v745
      %v874 = vunpack.c.l.b16 %v746
      %v875 = vunpack.c.l.b16 %v747
      %v876 = vunpack.c.l.b16 %v748
      %v877 = vunpack.c.l.b16 %v749
      %v878 = vunpack.c.l.b16 %v750
      %v879 = vunpack.c.l.b16 %v751
      %v880 = vunpack.c.l.b16 %v752
      %v881 = vunpack.c.l.b16 %v753
      %v882 = vunpack.c.l.b16 %v754
      %v883 = vunpack.c.l.b16 %v755
      %v884 = vunpack.c.l.b16 %v756
      %v885 = vunpack.c.l.b16 %v757
      %v886 = vunpack.c.l.b16 %v758
      %v887 = vunpack.c.l.b16 %v759
      %v888 = vpack.c.b16 %v849, %v848
      %v889 = vpack.c.b16 %v851, %v850
      %v890 = vpack.c.b16 %v853, %v852
      %v891 = vpack.c.b16 %v855, %v854
      %v892 = vpack.c.b16 %v857, %v856
      %v893 = vpack.c.b16 %v859, %v858
      %v894 = vpack.c.b16 %v861, %v860
      %v895 = vpack.c.b16 %v863, %v862
      %v896 = vpack.c.b16 %v865, %v864
      %v897 = vpack.c.b16 %v867, %v866
      %v898 = vpack.c.b16 %v869, %v868
      %v899 = vpack.c.b16 %v871, %v870
      %v900 = vpack.c.b16 %v873, %v872
      %v901 = vpack.c.b16 %v875, %v874
      %v902 = vpack.c.b16 %v877, %v876
      %v903 = vpack.c.b16 %v879, %v878
      %v904 = vpack.c.b16 %v881, %v880
      %v905 = vpack.c.b16 %v883, %v882
      %v906 = vpack.c.b16 %v885, %v884
      %v907 = vpack.c.b16 %v887, %v886
      %928 = vmatprep.subr.bf16.mxu0 0
      %929 = vmatpush1.bf16.msra.mxu0 %v767
      %930 = vmatprep.subr.bf16.mxu0 0
      %931 = vmatpush1.bf16.msra.mxu0 %v766
      %932 = vmatprep.subr.bf16.mxu0 0
      %933 = vmatpush1.bf16.msra.mxu0 %v765
      %934 = vmatprep.subr.bf16.mxu0 0
      %935 = vmatpush1.bf16.msra.mxu0 %v764
      %936 = vmatprep.subr.bf16.mxu0 0
      %937 = vmatpush1.bf16.msra.mxu0 %v763
      %938 = vmatprep.subr.bf16.mxu0 0
      %939 = vmatpush1.bf16.msra.mxu0 %v762
      %940 = vmatprep.subr.bf16.mxu0 0
      %941 = vmatpush1.bf16.msra.mxu0 %v761
      %942 = vmatprep.subr.bf16.mxu0 0
      %943 = vmatpush1.bf16.msra.mxu0 %v760
      %944 = vmatprep.subr.bf16.mxu0 0
      %945 = vmatpush2.bf16.msra.mxu0 0
      %946 = vmatprep.subr.bf16.mxu0 0
      %947 = vmatpush2.bf16.msra.mxu0 0
      %948 = vmatprep.subr.bf16.mxu0 0
      %949 = vmatpush2.bf16.msra.mxu0 0
      %950 = vmatprep.subr.bf16.mxu0 0
      %951 = vmatpush2.bf16.msra.mxu0 0
      %952 = vmatprep.subr.bf16.mxu0 0
      %953 = vmatpush2.bf16.msra.mxu0 0
      %954 = vmatprep.subr.bf16.mxu0 0
      %955 = vmatpush2.bf16.msra.mxu0 0
      %956 = vmatprep.subr.bf16.mxu0 0
      %957 = vmatpush2.bf16.msra.mxu0 0
      %958 = vmatprep.subr.bf16.mxu0 0
      %959 = vmatpush2.bf16.msra.mxu0 0
      %960 = vmatprep.mubr.bf16.mxu0 0
      %961 = vmatmul.mubr.bf16.gmra.mxu0 %v888
      %v962 = vpop.f32.mrf.mxu0
      %v963 = vadd.f32 %v768, %v962
      %v964 = vpop.f32.mrf.mxu0
      %v965 = vpop.f32.mrf.mxu0
      %v966 = vadd.f32 %v769, %v965
      %v967 = vpop.f32.mrf.mxu0
      %968 = vmatprep.mubr.bf16.mxu0 0
      %969 = vmatmul.mubr.bf16.gmra.mxu0 %v889
      %v970 = vpop.f32.mrf.mxu0
      %v971 = vadd.f32 %v770, %v970
      %v972 = vpop.f32.mrf.mxu0
      %v973 = vpop.f32.mrf.mxu0
      %v974 = vadd.f32 %v771, %v973
      %v975 = vpop.f32.mrf.mxu0
      %976 = vmatprep.mubr.bf16.mxu0 0
      %977 = vmatmul.mubr.bf16.gmra.mxu0 %v890
      %v978 = vpop.f32.mrf.mxu0
      %v979 = vadd.f32 %v772, %v978
      %v980 = vpop.f32.mrf.mxu0
      %v981 = vpop.f32.mrf.mxu0
      %v982 = vadd.f32 %v773, %v981
      %v983 = vpop.f32.mrf.mxu0
      %984 = vmatprep.mubr.bf16.mxu0 0
      %985 = vmatmul.mubr.bf16.gmra.mxu0 %v891
      %v986 = vpop.f32.mrf.mxu0
      %v987 = vadd.f32 %v774, %v986
      %v988 = vpop.f32.mrf.mxu0
      %v989 = vpop.f32.mrf.mxu0
      %v990 = vadd.f32 %v775, %v989
      %v991 = vpop.f32.mrf.mxu0
      %992 = vmatprep.mubr.bf16.mxu0 0
      %993 = vmatmul.mubr.bf16.gmra.mxu0 %v892
      %v994 = vpop.f32.mrf.mxu0
      %v995 = vadd.f32 %v776, %v994
      %v996 = vpop.f32.mrf.mxu0
      %v997 = vpop.f32.mrf.mxu0
      %v998 = vadd.f32 %v777, %v997
      %v999 = vpop.f32.mrf.mxu0
      %1000 = vmatprep.mubr.bf16.mxu0 0
      %1001 = vmatmul.mubr.bf16.gmra.mxu0 %v893
      %v1002 = vpop.f32.mrf.mxu0
      %v1003 = vadd.f32 %v778, %v1002
      %v1004 = vpop.f32.mrf.mxu0
      %v1005 = vpop.f32.mrf.mxu0
      %v1006 = vadd.f32 %v779, %v1005
      %v1007 = vpop.f32.mrf.mxu0
      %1008 = vmatprep.mubr.bf16.mxu0 0
      %1009 = vmatmul.mubr.bf16.gmra.mxu0 %v894
      %v1010 = vpop.f32.mrf.mxu0
      %v1011 = vadd.f32 %v780, %v1010
      %v1012 = vpop.f32.mrf.mxu0
      %v1013 = vpop.f32.mrf.mxu0
      %v1014 = vadd.f32 %v781, %v1013
      %v1015 = vpop.f32.mrf.mxu0
      %1016 = vmatprep.mubr.bf16.mxu0 0
      %1017 = vmatmul.mubr.bf16.gmra.mxu0 %v895
      %v1018 = vpop.f32.mrf.mxu0
      %v1019 = vadd.f32 %v782, %v1018
      %v1020 = vpop.f32.mrf.mxu0
      %v1021 = vpop.f32.mrf.mxu0
      %v1022 = vadd.f32 %v783, %v1021
      %v1023 = vpop.f32.mrf.mxu0
      %1024 = vmatprep.mubr.bf16.mxu0 0
      %1025 = vmatmul.mubr.bf16.gmra.mxu0 %v896
      %v1026 = vpop.f32.mrf.mxu0
      %v1027 = vadd.f32 %v784, %v1026
      %v1028 = vpop.f32.mrf.mxu0
      %v1029 = vpop.f32.mrf.mxu0
      %v1030 = vadd.f32 %v785, %v1029
      %v1031 = vpop.f32.mrf.mxu0
      %1032 = vmatprep.mubr.bf16.mxu0 0
      %1033 = vmatmul.mubr.bf16.gmra.mxu0 %v897
      %v1034 = vpop.f32.mrf.mxu0
      %v1035 = vadd.f32 %v786, %v1034
      %v1036 = vpop.f32.mrf.mxu0
      %v1037 = vpop.f32.mrf.mxu0
      %v1038 = vadd.f32 %v787, %v1037
      %v1039 = vpop.f32.mrf.mxu0
      %1040 = vmatprep.mubr.bf16.mxu0 0
      %1041 = vmatmul.mubr.bf16.gmra.mxu0 %v898
      %v1042 = vpop.f32.mrf.mxu0
      %v1043 = vadd.f32 %v788, %v1042
      %v1044 = vpop.f32.mrf.mxu0
      %v1045 = vpop.f32.mrf.mxu0
      %v1046 = vadd.f32 %v789, %v1045
      %v1047 = vpop.f32.mrf.mxu0
      %1048 = vmatprep.mubr.bf16.mxu0 0
      %1049 = vmatmul.mubr.bf16.gmra.mxu0 %v899
      %v1050 = vpop.f32.mrf.mxu0
      %v1051 = vadd.f32 %v790, %v1050
      %v1052 = vpop.f32.mrf.mxu0
      %v1053 = vpop.f32.mrf.mxu0
      %v1054 = vadd.f32 %v791, %v1053
      %v1055 = vpop.f32.mrf.mxu0
      %1056 = vmatprep.mubr.bf16.mxu0 0
      %1057 = vmatmul.mubr.bf16.gmra.mxu0 %v900
      %v1058 = vpop.f32.mrf.mxu0
      %v1059 = vadd.f32 %v792, %v1058
      %v1060 = vpop.f32.mrf.mxu0
      %v1061 = vpop.f32.mrf.mxu0
      %v1062 = vadd.f32 %v793, %v1061
      %v1063 = vpop.f32.mrf.mxu0
      %1064 = vmatprep.mubr.bf16.mxu0 0
      %1065 = vmatmul.mubr.bf16.gmra.mxu0 %v901
      %v1066 = vpop.f32.mrf.mxu0
      %v1067 = vadd.f32 %v794, %v1066
      %v1068 = vpop.f32.mrf.mxu0
      %v1069 = vpop.f32.mrf.mxu0
      %v1070 = vadd.f32 %v795, %v1069
      %v1071 = vpop.f32.mrf.mxu0
      %1072 = vmatprep.mubr.bf16.mxu0 0
      %1073 = vmatmul.mubr.bf16.gmra.mxu0 %v902
      %v1074 = vpop.f32.mrf.mxu0
      %v1075 = vadd.f32 %v796, %v1074
      %v1076 = vpop.f32.mrf.mxu0
      %v1077 = vpop.f32.mrf.mxu0
      %v1078 = vadd.f32 %v797, %v1077
      %v1079 = vpop.f32.mrf.mxu0
      %1080 = vmatprep.mubr.bf16.mxu0 0
      %1081 = vmatmul.mubr.bf16.gmra.mxu0 %v903
      %v1082 = vpop.f32.mrf.mxu0
      %v1083 = vadd.f32 %v798, %v1082
      %v1084 = vpop.f32.mrf.mxu0
      %v1085 = vpop.f32.mrf.mxu0
      %v1086 = vadd.f32 %v799, %v1085
      %v1087 = vpop.f32.mrf.mxu0
      %1088 = vmatprep.mubr.bf16.mxu0 0
      %1089 = vmatmul.mubr.bf16.gmra.mxu0 %v904
      %v1090 = vpop.f32.mrf.mxu0
      %v1091 = vadd.f32 %v800, %v1090
      %v1092 = vpop.f32.mrf.mxu0
      %v1093 = vpop.f32.mrf.mxu0
      %v1094 = vadd.f32 %v801, %v1093
      %v1095 = vpop.f32.mrf.mxu0
      %1096 = vmatprep.mubr.bf16.mxu0 0
      %1097 = vmatmul.mubr.bf16.gmra.mxu0 %v905
      %v1098 = vpop.f32.mrf.mxu0
      %v1099 = vadd.f32 %v802, %v1098
      %v1100 = vpop.f32.mrf.mxu0
      %v1101 = vpop.f32.mrf.mxu0
      %v1102 = vadd.f32 %v803, %v1101
      %v1103 = vpop.f32.mrf.mxu0
      %1104 = vmatprep.mubr.bf16.mxu0 0
      %1105 = vmatmul.mubr.bf16.gmra.mxu0 %v906
      %v1106 = vpop.f32.mrf.mxu0
      %v1107 = vadd.f32 %v804, %v1106
      %v1108 = vpop.f32.mrf.mxu0
      %v1109 = vpop.f32.mrf.mxu0
      %v1110 = vadd.f32 %v805, %v1109
      %v1111 = vpop.f32.mrf.mxu0
      %1112 = vmatprep.mubr.bf16.mxu0 0
      %1113 = vmatmul.mubr.bf16.gmra.mxu0 %v907
      %v1114 = vpop.f32.mrf.mxu0
      %v1115 = vadd.f32 %v806, %v1114
      %v1116 = vpop.f32.mrf.mxu0
      %v1117 = vpop.f32.mrf.mxu0
      %v1118 = vadd.f32 %v807, %v1117
      %v1119 = vpop.f32.mrf.mxu0
      %1120 = vdwg.mxu0
      %v1121 = vxor.u32 %v963, 2147483648
      %v1122 = vxor.u32 %v966, 2147483648
      %v1123 = vxor.u32 %v971, 2147483648
      %v1124 = vxor.u32 %v974, 2147483648
      %v1125 = vxor.u32 %v979, 2147483648
      %v1126 = vxor.u32 %v982, 2147483648
      %v1127 = vxor.u32 %v987, 2147483648
      %v1128 = vxor.u32 %v990, 2147483648
      %v1129 = vxor.u32 %v995, 2147483648
      %v1130 = vxor.u32 %v998, 2147483648
      %v1131 = vxor.u32 %v1003, 2147483648
      %v1132 = vxor.u32 %v1006, 2147483648
      %v1133 = vxor.u32 %v1011, 2147483648
      %v1134 = vxor.u32 %v1014, 2147483648
      %v1135 = vxor.u32 %v1019, 2147483648
      %v1136 = vxor.u32 %v1022, 2147483648
      %v1137 = vxor.u32 %v1027, 2147483648
      %v1138 = vxor.u32 %v1030, 2147483648
      %v1139 = vxor.u32 %v1035, 2147483648
      %v1140 = vxor.u32 %v1038, 2147483648
      %v1141 = vxor.u32 %v1043, 2147483648
      %v1142 = vxor.u32 %v1046, 2147483648
      %v1143 = vxor.u32 %v1051, 2147483648
      %v1144 = vxor.u32 %v1054, 2147483648
      %v1145 = vxor.u32 %v1059, 2147483648
      %v1146 = vxor.u32 %v1062, 2147483648
      %v1147 = vxor.u32 %v1067, 2147483648
      %v1148 = vxor.u32 %v1070, 2147483648
      %v1149 = vxor.u32 %v1075, 2147483648
      %v1150 = vxor.u32 %v1078, 2147483648
      %v1151 = vxor.u32 %v1083, 2147483648
      %v1152 = vxor.u32 %v1086, 2147483648
      %v1153 = vxor.u32 %v1091, 2147483648
      %v1154 = vxor.u32 %v1094, 2147483648
      %v1155 = vxor.u32 %v1099, 2147483648
      %v1156 = vxor.u32 %v1102, 2147483648
      %v1157 = vxor.u32 %v1107, 2147483648
      %v1158 = vxor.u32 %v1110, 2147483648
      %v1159 = vxor.u32 %v1115, 2147483648
      %v1160 = vxor.u32 %v1118, 2147483648
      %v1161 = vmul.f32 %v1121, 1.442695
      %v1162 = vpow.pop %v1161
      %v1163 = vmul.f32 %v1122, 1.442695
      %v1164 = vpow.pop %v1163
      %v1165 = vmul.f32 %v1123, 1.442695
      %v1166 = vpow.pop %v1165
      %v1167 = vmul.f32 %v1124, 1.442695
      %v1168 = vpow.pop %v1167
      %v1169 = vmul.f32 %v1125, 1.442695
      %v1170 = vpow.pop %v1169
      %v1171 = vmul.f32 %v1126, 1.442695
      %v1172 = vpow.pop %v1171
      %v1173 = vmul.f32 %v1127, 1.442695
      %v1174 = vpow.pop %v1173
      %v1175 = vmul.f32 %v1128, 1.442695
      %v1176 = vpow.pop %v1175
      %v1177 = vmul.f32 %v1129, 1.442695
      %v1178 = vpow.pop %v1177
      %v1179 = vmul.f32 %v1130, 1.442695
      %v1180 = vpow.pop %v1179
      %v1181 = vmul.f32 %v1131, 1.442695
      %v1182 = vpow.pop %v1181
      %v1183 = vmul.f32 %v1132, 1.442695
      %v1184 = vpow.pop %v1183
      %v1185 = vmul.f32 %v1133, 1.442695
      %v1186 = vpow.pop %v1185
      %v1187 = vmul.f32 %v1134, 1.442695
      %v1188 = vpow.pop %v1187
      %v1189 = vmul.f32 %v1135, 1.442695
      %v1190 = vpow.pop %v1189
      %v1191 = vmul.f32 %v1136, 1.442695
      %v1192 = vpow.pop %v1191
      %v1193 = vmul.f32 %v1137, 1.442695
      %v1194 = vpow.pop %v1193
      %v1195 = vmul.f32 %v1138, 1.442695
      %v1196 = vpow.pop %v1195
      %v1197 = vmul.f32 %v1139, 1.442695
      %v1198 = vpow.pop %v1197
      %v1199 = vmul.f32 %v1140, 1.442695
      %v1200 = vpow.pop %v1199
      %v1201 = vmul.f32 %v1141, 1.442695
      %v1202 = vpow.pop %v1201
      %v1203 = vmul.f32 %v1142, 1.442695
      %v1204 = vpow.pop %v1203
      %v1205 = vmul.f32 %v1143, 1.442695
      %v1206 = vpow.pop %v1205
      %v1207 = vmul.f32 %v1144, 1.442695
      %v1208 = vpow.pop %v1207
      %v1209 = vmul.f32 %v1145, 1.442695
      %v1210 = vpow.pop %v1209
      %v1211 = vmul.f32 %v1146, 1.442695
      %v1212 = vpow.pop %v1211
      %v1213 = vmul.f32 %v1147, 1.442695
      %v1214 = vpow.pop %v1213
      %v1215 = vmul.f32 %v1148, 1.442695
      %v1216 = vpow.pop %v1215
      %v1217 = vmul.f32 %v1149, 1.442695
      %v1218 = vpow.pop %v1217
      %v1219 = vmul.f32 %v1150, 1.442695
      %v1220 = vpow.pop %v1219
      %v1221 = vmul.f32 %v1151, 1.442695
      %v1222 = vpow.pop %v1221
      %v1223 = vmul.f32 %v1152, 1.442695
      %v1224 = vpow.pop %v1223
      %v1225 = vmul.f32 %v1153, 1.442695
      %v1226 = vpow.pop %v1225
      %v1227 = vmul.f32 %v1154, 1.442695
      %v1228 = vpow.pop %v1227
      %v1229 = vmul.f32 %v1155, 1.442695
      %v1230 = vpow.pop %v1229
      %v1231 = vmul.f32 %v1156, 1.442695
      %v1232 = vpow.pop %v1231
      %v1233 = vmul.f32 %v1157, 1.442695
      %v1234 = vpow.pop %v1233
      %v1235 = vmul.f32 %v1158, 1.442695
      %v1236 = vpow.pop %v1235
      %v1237 = vmul.f32 %v1159, 1.442695
      %v1238 = vpow.pop %v1237
      %v1239 = vmul.f32 %v1160, 1.442695
      %v1240 = vpow.pop %v1239
      %v1241 = vadd.f32 %v1162, 1.0
      %v1242 = vadd.f32 %v1164, 1.0
      %v1243 = vadd.f32 %v1166, 1.0
      %v1244 = vadd.f32 %v1168, 1.0
      %v1245 = vadd.f32 %v1170, 1.0
      %v1246 = vadd.f32 %v1172, 1.0
      %v1247 = vadd.f32 %v1174, 1.0
      %v1248 = vadd.f32 %v1176, 1.0
      %v1249 = vadd.f32 %v1178, 1.0
      %v1250 = vadd.f32 %v1180, 1.0
      %v1251 = vadd.f32 %v1182, 1.0
      %v1252 = vadd.f32 %v1184, 1.0
      %v1253 = vadd.f32 %v1186, 1.0
      %v1254 = vadd.f32 %v1188, 1.0
      %v1255 = vadd.f32 %v1190, 1.0
      %v1256 = vadd.f32 %v1192, 1.0
      %v1257 = vadd.f32 %v1194, 1.0
      %v1258 = vadd.f32 %v1196, 1.0
      %v1259 = vadd.f32 %v1198, 1.0
      %v1260 = vadd.f32 %v1200, 1.0
      %v1261 = vadd.f32 %v1202, 1.0
      %v1262 = vadd.f32 %v1204, 1.0
      %v1263 = vadd.f32 %v1206, 1.0
      %v1264 = vadd.f32 %v1208, 1.0
      %v1265 = vadd.f32 %v1210, 1.0
      %v1266 = vadd.f32 %v1212, 1.0
      %v1267 = vadd.f32 %v1214, 1.0
      %v1268 = vadd.f32 %v1216, 1.0
      %v1269 = vadd.f32 %v1218, 1.0
      %v1270 = vadd.f32 %v1220, 1.0
      %v1271 = vadd.f32 %v1222, 1.0
      %v1272 = vadd.f32 %v1224, 1.0
      %v1273 = vadd.f32 %v1226, 1.0
      %v1274 = vadd.f32 %v1228, 1.0
      %v1275 = vadd.f32 %v1230, 1.0
      %v1276 = vadd.f32 %v1232, 1.0
      %v1277 = vadd.f32 %v1234, 1.0
      %v1278 = vadd.f32 %v1236, 1.0
      %v1279 = vadd.f32 %v1238, 1.0
      %v1280 = vadd.f32 %v1240, 1.0
      %v1281 = vrcp.pop %v1241
      %v1282 = vmul.f32 1.0, %v1281
      %v1283 = vrcp.pop %v1242
      %v1284 = vmul.f32 1.0, %v1283
      %v1285 = vrcp.pop %v1243
      %v1286 = vmul.f32 1.0, %v1285
      %v1287 = vrcp.pop %v1244
      %v1288 = vmul.f32 1.0, %v1287
      %v1289 = vrcp.pop %v1245
      %v1290 = vmul.f32 1.0, %v1289
      %v1291 = vrcp.pop %v1246
      %v1292 = vmul.f32 1.0, %v1291
      %v1293 = vrcp.pop %v1247
      %v1294 = vmul.f32 1.0, %v1293
      %v1295 = vrcp.pop %v1248
      %v1296 = vmul.f32 1.0, %v1295
      %v1297 = vrcp.pop %v1249
      %v1298 = vmul.f32 1.0, %v1297
      %v1299 = vrcp.pop %v1250
      %v1300 = vmul.f32 1.0, %v1299
      %v1301 = vrcp.pop %v1251
      %v1302 = vmul.f32 1.0, %v1301
      %v1303 = vrcp.pop %v1252
      %v1304 = vmul.f32 1.0, %v1303
      %v1305 = vrcp.pop %v1253
      %v1306 = vmul.f32 1.0, %v1305
      %v1307 = vrcp.pop %v1254
      %v1308 = vmul.f32 1.0, %v1307
      %v1309 = vrcp.pop %v1255
      %v1310 = vmul.f32 1.0, %v1309
      %v1311 = vrcp.pop %v1256
      %v1312 = vmul.f32 1.0, %v1311
      %v1313 = vrcp.pop %v1257
      %v1314 = vmul.f32 1.0, %v1313
      %v1315 = vrcp.pop %v1258
      %v1316 = vmul.f32 1.0, %v1315
      %v1317 = vrcp.pop %v1259
      %v1318 = vmul.f32 1.0, %v1317
      %v1319 = vrcp.pop %v1260
      %v1320 = vmul.f32 1.0, %v1319
      %v1321 = vrcp.pop %v1261
      %v1322 = vmul.f32 1.0, %v1321
      %v1323 = vrcp.pop %v1262
      %v1324 = vmul.f32 1.0, %v1323
      %v1325 = vrcp.pop %v1263
      %v1326 = vmul.f32 1.0, %v1325
      %v1327 = vrcp.pop %v1264
      %v1328 = vmul.f32 1.0, %v1327
      %v1329 = vrcp.pop %v1265
      %v1330 = vmul.f32 1.0, %v1329
      %v1331 = vrcp.pop %v1266
      %v1332 = vmul.f32 1.0, %v1331
      %v1333 = vrcp.pop %v1267
      %v1334 = vmul.f32 1.0, %v1333
      %v1335 = vrcp.pop %v1268
      %v1336 = vmul.f32 1.0, %v1335
      %v1337 = vrcp.pop %v1269
      %v1338 = vmul.f32 1.0, %v1337
      %v1339 = vrcp.pop %v1270
      %v1340 = vmul.f32 1.0, %v1339
      %v1341 = vrcp.pop %v1271
      %v1342 = vmul.f32 1.0, %v1341
      %v1343 = vrcp.pop %v1272
      %v1344 = vmul.f32 1.0, %v1343
      %v1345 = vrcp.pop %v1273
      %v1346 = vmul.f32 1.0, %v1345
      %v1347 = vrcp.pop %v1274
      %v1348 = vmul.f32 1.0, %v1347
      %v1349 = vrcp.pop %v1275
      %v1350 = vmul.f32 1.0, %v1349
      %v1351 = vrcp.pop %v1276
      %v1352 = vmul.f32 1.0, %v1351
      %v1353 = vrcp.pop %v1277
      %v1354 = vmul.f32 1.0, %v1353
      %v1355 = vrcp.pop %v1278
      %v1356 = vmul.f32 1.0, %v1355
      %v1357 = vrcp.pop %v1279
      %v1358 = vmul.f32 1.0, %v1357
      %v1359 = vrcp.pop %v1280
      %v1360 = vmul.f32 1.0, %v1359
      %vm1361 = vcmask 7168
      %1362 = vst.msk [vmem:[%s255] sm:$0xff] %vm1361, %v1282
      %1363 = vst.msk [vmem:[%s255 + $0x8] sm:$0xff] %vm1361, %v1284
      %1364 = vst.msk [vmem:[%s255 + $0x10] sm:$0xff] %vm1361, %v1286
      %1365 = vst.msk [vmem:[%s255 + $0x18] sm:$0xff] %vm1361, %v1288
      %1366 = vst.msk [vmem:[%s255 + $0x20] sm:$0xff] %vm1361, %v1290
      %1367 = vst.msk [vmem:[%s255 + $0x28] sm:$0xff] %vm1361, %v1292
      %1368 = vst.msk [vmem:[%s255 + $0x30] sm:$0xff] %vm1361, %v1294
      %1369 = vst.msk [vmem:[%s255 + $0x38] sm:$0xff] %vm1361, %v1296
      %1370 = vst.msk [vmem:[%s255 + $0x40] sm:$0xff] %vm1361, %v1298
      %1371 = vst.msk [vmem:[%s255 + $0x48] sm:$0xff] %vm1361, %v1300
      %1372 = vst.msk [vmem:[%s255 + $0x50] sm:$0xff] %vm1361, %v1302
      %1373 = vst.msk [vmem:[%s255 + $0x58] sm:$0xff] %vm1361, %v1304
      %1374 = vst.msk [vmem:[%s255 + $0x60] sm:$0xff] %vm1361, %v1306
      %1375 = vst.msk [vmem:[%s255 + $0x68] sm:$0xff] %vm1361, %v1308
      %1376 = vst.msk [vmem:[%s255 + $0x70] sm:$0xff] %vm1361, %v1310
      %1377 = vst.msk [vmem:[%s255 + $0x78] sm:$0xff] %vm1361, %v1312
      %1378 = vst.msk [vmem:[%s255 + $0x80] sm:$0xff] %vm1361, %v1314
      %1379 = vst.msk [vmem:[%s255 + $0x88] sm:$0xff] %vm1361, %v1316
      %1380 = vst.msk [vmem:[%s255 + $0x90] sm:$0xff] %vm1361, %v1318
      %1381 = vst.msk [vmem:[%s255 + $0x98] sm:$0xff] %vm1361, %v1320
      %1382 = vst.msk [vmem:[%s255 + $0xa0] sm:$0xff] %vm1361, %v1322
      %1383 = vst.msk [vmem:[%s255 + $0xa8] sm:$0xff] %vm1361, %v1324
      %1384 = vst.msk [vmem:[%s255 + $0xb0] sm:$0xff] %vm1361, %v1326
      %1385 = vst.msk [vmem:[%s255 + $0xb8] sm:$0xff] %vm1361, %v1328
      %1386 = vst.msk [vmem:[%s255 + $0xc0] sm:$0xff] %vm1361, %v1330
      %1387 = vst.msk [vmem:[%s255 + $0xc8] sm:$0xff] %vm1361, %v1332
      %1388 = vst.msk [vmem:[%s255 + $0xd0] sm:$0xff] %vm1361, %v1334
      %1389 = vst.msk [vmem:[%s255 + $0xd8] sm:$0xff] %vm1361, %v1336
      %1390 = vst.msk [vmem:[%s255 + $0xe0] sm:$0xff] %vm1361, %v1338
      %1391 = vst.msk [vmem:[%s255 + $0xe8] sm:$0xff] %vm1361, %v1340
      %1392 = vst.msk [vmem:[%s255 + $0xf0] sm:$0xff] %vm1361, %v1342
      %1393 = vst.msk [vmem:[%s255 + $0xf8] sm:$0xff] %vm1361, %v1344
      %1394 = vst.msk [vmem:[%s255 + $0x100] sm:$0xff] %vm1361, %v1346
      %1395 = vst.msk [vmem:[%s255 + $0x108] sm:$0xff] %vm1361, %v1348
      %1396 = vst.msk [vmem:[%s255 + $0x110] sm:$0xff] %vm1361, %v1350
      %1397 = vst.msk [vmem:[%s255 + $0x118] sm:$0xff] %vm1361, %v1352
      %1398 = vst.msk [vmem:[%s255 + $0x120] sm:$0xff] %vm1361, %v1354
      %1399 = vst.msk [vmem:[%s255 + $0x128] sm:$0xff] %vm1361, %v1356
      %1400 = vst.msk [vmem:[%s255 + $0x130] sm:$0xff] %vm1361, %v1358
      %1401 = vst.msk [vmem:[%s255 + $0x138] sm:$0xff] %vm1361, %v1360
      %p1402 = scmp.lt.s32.totalorder %s20, 1
      %s1403 = scalar_select %p1402, %s20, 1
      %p1404 = scmp.lt.s32.totalorder %s21, 0
      %s1405 = scalar_select %p1404, %s21, 0
      %s1406 = smul.addr %s1403, 40
      %s1407 = sadd.s32 %s1405, %s1406
      %s1408 = smul.addr %s1407, 8
      %s1409 = scalar_lea.vmem %s5, %s1408
      // Predicated region
      $region41: #{tpu_custom_call.1} parent=39 // pred_check
        %p1410 = pneg %p160
      $region42: #{tpu_custom_call.1} parent=39 // pred_check_branch
        %1412 = sbr.rel (%p1410) target = $region44
      $region43: #{tpu_custom_call.1} parent=39 // pred_region
        _
      $region44: #{tpu_custom_call.1} parent=39 // pred_fallthru
        _
    $region40: #{tpu_custom_call.1} parent=5 // pred_fallthru
      _
    %p1413 = scmp.le.s32.totalorder 2, %s11
    // Predicated region
    $region45: #{tpu_custom_call.1} parent=5 // pred_check
      %p1414 = pneg %p1413
    $region46: #{tpu_custom_call.1} parent=5 // pred_check_branch
      %1416 = sbr.rel (%p1414) target = $region48
    $region47: #{tpu_custom_call.1} parent=5 // pred_region
      %s1417 = ssub.s32 %s11, 2
      // Predicated region
      $region49: #{tpu_custom_call.1} parent=47 // pred_check
        %p1418 = pneg %p166
      $region50: #{tpu_custom_call.1} parent=47 // pred_check_branch
        %1420 = sbr.rel (%p1418) target = $region52
      $region51: #{tpu_custom_call.1} parent=47 // pred_region
        %p1421 = scmp.lt.s32.totalorder %s22, 1
        %s1422 = scalar_select %p1421, %s22, 1
        %p1423 = scmp.lt.s32.totalorder %s23, 0
        %s1424 = scalar_select %p1423, %s23, 0
        %s1425 = smul.addr %s1422, 40
        %s1426 = sadd.s32 %s1424, %s1425
        %s1427 = smul.addr %s1426, 8
        %s1428 = scalar_lea.vmem %s5, %s1427
      $region52: #{tpu_custom_call.1} parent=47 // pred_fallthru
        _
    $region48: #{tpu_custom_call.1} parent=5 // pred_fallthru
      _
  $region6: #{tpu_custom_call.1} parent=0 // loop_footer
    %s15 = sadd.s32 1, %s11
  $region7: #{tpu_custom_call.1} parent=0 // loop_footer_branch
    %10 = sbr.rel target = $region3
  $region8: #{tpu_custom_call.1} parent=0 // loop_exit
    _

</llo_original>
